<compile_context>
chip_gen: v7x
topology: tpu7x:2x2x1
jax: 0.10.0
libtpu: 0.0.40
codegen_flags: <defaults>
</compile_context>

<pallas_src>
import jax
import jax.numpy as jnp
from jax.experimental import pallas as pl
from jax.experimental.pallas import tpu as pltpu


_PACK = 128   # lane-dense packed output width: 1 out lane + Fn feature lanes + zero pad


def _round_up(x, m):
    return ((x + m - 1) // m) * m


def _pick_hw_chunk(hw, max_chw):
    """Largest multiple-of-128 divisor of hw that is <= max_chw (else full hw)."""
    if hw % 128 != 0:
        return hw                      # must take the full (non-128-aligned) dim
    cands = [c for c in range(128, min(hw, max_chw) + 1, 128) if hw % c == 0]
    return max(cands) if cands else hw


def _pf_kernel(
    x_ref,        # (tb, Cin+1, chw)  image tile, ones channel appended, HW chunk on lanes
    dense_ref,    # (tb, D)           dense tabular features
    w_fc_ref,     # (Fb, Cin+1)       stem weight (bias folded into ones channel)
    w_pool_ref,   # (Fb, 128)         packed head weights acting on the sum-pooled features
    w_dense_ref,  # (D, 128)          packed head weights acting on dense features
    b_pack_ref,   # (1, 128)          packed bias
    pack_ref,     # (tb, 128)         output slab: lane 0 = fc2 output, lanes 1..1+Fn = features
    acc_ref,      # (tb, Fb)          VMEM scratch: sum-pool accumulator over HW chunks
):
    f32 = jnp.float32
    k = pl.program_id(1)

    @pl.when(k == 0)
    def _init():
        acc_ref[...] = jnp.zeros_like(acc_ref)

    tb, fb = acc_ref.shape
    xb = x_ref[...]                                        # (tb, Cin+1, chw)
    w_fc = w_fc_ref[...]                                   # (Fb, Cin+1)
    # Broadcast the tiny stem weight once per grid step and run ONE batched
    # stem matmul for the whole batch tile (per-sample (Fb,Cin+1)@(Cin+1,chw)).
    wb = jnp.broadcast_to(w_fc[None], (tb,) + w_fc.shape)  # (tb, Fb, Cin+1)
    h = jnp.einsum("bfc,bch->bfh", wb, xb,
                   preferred_element_type=f32)             # (tb, Fb, chw)
    h = jnp.maximum(h, 0.0)                                # ReLU (VPU)
    # Sum-pool this HW chunk with a lane reduce (XLU) — 1/HW is folded into w_pool.
    acc_ref[...] += jnp.sum(h, axis=-1)                    # (tb, Fb)

    @pl.when(k == pl.num_programs(1) - 1)
    def _finalize():
        pooled = acc_ref[...]                              # (tb, Fb)
        pack = (jnp.dot(pooled, w_pool_ref[...], preferred_element_type=f32)
                + jnp.dot(dense_ref[...].astype(f32), w_dense_ref[...],
                          preferred_element_type=f32)
                + b_pack_ref[...])                         # (tb, 128)
        pack_ref[...] = pack.astype(pack_ref.dtype)        # one unmasked lane-dense store


def _pack_head_params(params, hw):
    """Fold fc2 into fc1, fold the 1/HW mean-pool factor, and pack the head.

    Packed output layout (width 128): lane 0 = model output, lanes 1..1+Fn =
    features (the replaced classifier output), remaining lanes = 0.
    """
    w_cls, b_cls = params["w_cls"], params["b_cls"]        # (Fb, Fn), (1, Fn)
    w1, b1 = params["w_fc1"], params["b_fc1"]              # (Fn+D, 64), (1, 64)
    w2, b2 = params["w_fc2"], params["b_fc2"]              # (64, 1),   (1, 1)
    fb, fn = w_cls.shape
    d = w1.shape[0] - fn

    # fc1 -> fc2 with no intervening nonlinearity: fold to a single (Fn+D, 1) map,
    # pre-split at Fn (features part / dense part) so there is no in-kernel slicing.
    w1h = w1[:fn] @ w2                                     # (Fn, 1)
    w2h = w1[fn:] @ w2                                     # (D, 1)
    b_eff = b1 @ w2 + b2                                   # (1, 1)

    # The kernel produces a SUM pool; fold the 1/HW mean factor into w_cls here.
    w_cls_s = w_cls / float(hw)

    w_pool = jnp.zeros((fb, _PACK), jnp.float32)
    w_pool = w_pool.at[:, 0:1].set(w_cls_s @ w1h)          # out contribution of pooled
    w_pool = w_pool.at[:, 1:1 + fn].set(w_cls_s)           # feature lanes
    w_dense = jnp.zeros((d, _PACK), jnp.float32).at[:, 0:1].set(w2h)
    b_pack = jnp.zeros((1, _PACK), jnp.float32)
    b_pack = b_pack.at[:, 0:1].set(b_cls @ w1h + b_eff)
    b_pack = b_pack.at[:, 1:1 + fn].set(b_cls)
    return w_pool, w_dense, b_pack, fn


def pf_model_forward(x_nchw, dense, params, *, tb=128, max_chw=512,
                     stem_dtype=jnp.float32):
    """Run the pf_model forward pass.

    x_nchw : (B, Cin, H, W)  image tensor (PyTorch NCHW convention)
    dense  : (B, D)          dense features
    returns (out, features) with shapes (B, 1) and (B, features_num)
    """
    B, Cin, H, W = x_nchw.shape
    D = dense.shape[1]
    hw = H * W

    # --- wrapper-side (free) weight algebra ---
    # Fold the stem bias into the weights via an appended ones channel.
    w_aug = jnp.concatenate([params["w_stem"], params["b_stem"]], axis=0)  # (Cin+1, Fb)
    w_fc = w_aug.T.astype(stem_dtype)                                      # (Fb, Cin+1)
    fb = w_fc.shape[0]
    cin_aug = Cin + 1
    w_pool, w_dense_pk, b_pack, fn = _pack_head_params(params, hw)

    # --- x: NCHW -> (B, Cin, HW) (free reshape), append ones channel ---
    x3 = x_nchw.reshape(B, Cin, hw).astype(stem_dtype)
    x3 = jnp.concatenate([x3, jnp.ones((B, 1, hw), stem_dtype)], axis=1)   # (B, Cin+1, HW)

    # Batch tile: default 128 (MXU/lane friendly), clamped for tiny batches.
    tb = max(8, min(int(tb), _round_up(B, 8)))
    b_pad = _round_up(B, tb)
    if b_pad != B:
        x3 = jnp.pad(x3, ((0, b_pad - B), (0, 0), (0, 0)))
        dense = jnp.pad(dense, ((0, b_pad - B), (0, 0)))
    dense = dense.astype(jnp.float32)

    # HW reduction axis: chunk HW so the per-step tile stays well inside VMEM
    # (keeps the kernel pipelined on v7x's 64 MiB at real backbone resolutions).
    chw = _pick_hw_chunk(hw, max_chw)
    n_hw = hw // chw

    pack = pl.pallas_call(
        _pf_kernel,
        out_shape=jax.ShapeDtypeStruct((b_pad, _PACK), jnp.float32),
        grid=(b_pad // tb, n_hw),
        in_specs=[
            pl.BlockSpec((tb, cin_aug, chw), lambda i, k: (i, 0, k)),  # x: pipelined
            pl.BlockSpec((tb, D), lambda i, k: (i, 0)),                # dense: per batch tile
            pl.BlockSpec((fb, cin_aug), lambda i, k: (0, 0)),          # weights: resident
            pl.BlockSpec((fb, _PACK), lambda i, k: (0, 0)),
            pl.BlockSpec((D, _PACK), lambda i, k: (0, 0)),
            pl.BlockSpec((1, _PACK), lambda i, k: (0, 0)),
        ],
        out_specs=pl.BlockSpec((tb, _PACK), lambda i, k: (i, 0)),      # resident across k
        scratch_shapes=[pltpu.VMEM((tb, fb), jnp.float32)],            # sum-pool accumulator
        compiler_params=pltpu.CompilerParams(
            dimension_semantics=("parallel", "arbitrary"),
            vmem_limit_bytes=48 * 1024 * 1024,   # explicit budget, safe on v7x's 64 MiB
        ),
    )(x3, dense, w_fc, w_pool, w_dense_pk, b_pack)

    out = pack[:B, 0:1]
    feats = pack[:B, 1:1 + fn]
    return out, feats


def init_params(key, *, cin=3, fb=32, features_num=8, dense_dim=4):
    """Deterministic parameter init (shapes follow pf_model.__init__)."""
    ks = jax.random.split(key, 8)
    scale = 0.05
    return {
        # stand-in backbone stem + replaced classifier
        "w_stem": scale * jax.random.normal(ks[0], (cin, fb), jnp.float32),
        "b_stem": scale * jax.random.normal(ks[1], (1, fb), jnp.float32),
        "w_cls":  scale * jax.random.normal(ks[2], (fb, features_num), jnp.float32),
        "b_cls":  scale * jax.random.normal(ks[3], (1, features_num), jnp.float32),
        # fc1: Linear(features_num + len(dense_columns), 64)
        "w_fc1":  scale * jax.random.normal(ks[4], (features_num + dense_dim, 64), jnp.float32),
        "b_fc1":  scale * jax.random.normal(ks[5], (1, 64), jnp.float32),
        # fc2: Linear(64, 1)
        "w_fc2":  scale * jax.random.normal(ks[6], (64, 1), jnp.float32),
        "b_fc2":  scale * jax.random.normal(ks[7], (1, 1), jnp.float32),
    }


def _reference_forward(x_nchw, dense, params):
    """Pure-JAX reference mirroring the (stand-in) PyTorch forward."""
    B, Cin, H, W = x_nchw.shape
    x = jnp.transpose(x_nchw, (0, 2, 3, 1)).reshape(B * H * W, Cin)
    h = jnp.maximum(x @ params["w_stem"] + params["b_stem"], 0.0)
    pooled = jnp.mean(h.reshape(B, H * W, -1), axis=1)
    features = pooled @ params["w_cls"] + params["b_cls"]
    cat = jnp.concatenate([features, dense], axis=1)
    z1 = cat @ params["w_fc1"] + params["b_fc1"]
    z2 = z1 @ params["w_fc2"] + params["b_fc2"]
    return z2, features


if __name__ == "__main__":
    key = jax.random.PRNGKey(0)
    k_x, k_d, k_p = jax.random.split(key, 3)

    B, Cin, H, W = 2, 3, 16, 16          # small NCHW image batch (in_chans=3)
    features_num = 8                      # cfg.features_num
    dense_dim = 4                         # len(cfg.dense_columns)
    fb = 32                               # stand-in backbone feature width

    x = jax.random.normal(k_x, (B, Cin, H, W), jnp.float32)
    dense = jax.random.normal(k_d, (B, dense_dim), jnp.float32)
    params = init_params(k_p, cin=Cin, fb=fb,
                         features_num=features_num, dense_dim=dense_dim)

    out, feats = pf_model_forward(x, dense, params)
    out = jax.block_until_ready(out)
    feats = jax.block_until_ready(feats)

    ref_out, ref_feats = _reference_forward(x, dense, params)
    assert out.shape == (B, 1) and feats.shape == (B, features_num)
    assert jnp.allclose(out, ref_out, atol=1e-4, rtol=1e-4), \
        float(jnp.max(jnp.abs(out - ref_out)))
    assert jnp.allclose(feats, ref_feats, atol=1e-4, rtol=1e-4), \
        float(jnp.max(jnp.abs(feats - ref_feats)))

    print("KERNEL_OK")
</pallas_src>

<mosaic_0001>
module attributes {stable_mosaic.version = 11 : i64} {
  func.func @_pf_kernel(%arg0: i32, %arg1: i32, %arg2: memref<8x4x256xf32, #tpu.memory_space<vmem>>, %arg3: memref<8x4xf32, #tpu.memory_space<vmem>>, %arg4: memref<32x4xf32, #tpu.memory_space<vmem>>, %arg5: memref<32x128xf32, #tpu.memory_space<vmem>>, %arg6: memref<4x128xf32, #tpu.memory_space<vmem>>, %arg7: memref<1x128xf32, #tpu.memory_space<vmem>>, %arg8: memref<8x128xf32, #tpu.memory_space<vmem>>, %arg9: memref<8x32xf32, #tpu.memory_space<vmem>>) attributes {dimension_semantics = [#tpu.dimension_semantics<parallel>, #tpu.dimension_semantics<arbitrary>], iteration_bounds = array<i64: 1, 1>, scalar_prefetch = 0 : i64, scratch_operands = 1 : i64, tpu.core_type = #tpu.core_type<tc>, window_params = [{transform_indices = @transform_0, window_bounds = array<i64: 8, 4, 256>}, {transform_indices = @transform_1, window_bounds = array<i64: 8, 4>}, {pipeline_mode = #tpu.pipeline_mode<synchronous>, transform_indices = @transform_2, window_bounds = array<i64: 32, 4>}, {pipeline_mode = #tpu.pipeline_mode<synchronous>, transform_indices = @transform_3, window_bounds = array<i64: 32, 128>}, {pipeline_mode = #tpu.pipeline_mode<synchronous>, transform_indices = @transform_4, window_bounds = array<i64: 4, 128>}, {pipeline_mode = #tpu.pipeline_mode<synchronous>, transform_indices = @transform_5, window_bounds = array<i64: 1, 128>}, {transform_indices = @transform_6, window_bounds = array<i64: 8, 128>}]} {
    %c0_i32 = arith.constant 0 : i32
    %0 = arith.cmpi eq, %arg1, %c0_i32 : i32
    %1 = arith.extui %0 : i1 to i32
    %c0_i32_0 = arith.constant 0 : i32
    %2 = arith.cmpi ne, %1, %c0_i32_0 : i32
    scf.if %2 {
      %cst_13 = arith.constant 0.000000e+00 : f32
      %18 = vector.broadcast %cst_13 : f32 to vector<8x32xf32>
      %c0_14 = arith.constant 0 : index
      %c0_15 = arith.constant 0 : index
      %19 = vector.load %arg9[%c0_14, %c0_15] : memref<8x32xf32, #tpu.memory_space<vmem>>, vector<8x32xf32>
      tpu.vector_store %arg9[%c0_14, %c0_15], %18 {strides = array<i32>} : memref<8x32xf32, #tpu.memory_space<vmem>>, vector<8x32xf32>,
    } else {
    }
    %c0 = arith.constant 0 : index
    %c0_1 = arith.constant 0 : index
    %c0_2 = arith.constant 0 : index
    %3 = vector.load %arg2[%c0, %c0_1, %c0_2] : memref<8x4x256xf32, #tpu.memory_space<vmem>>, vector<8x4x256xf32>
    %c0_3 = arith.constant 0 : index
    %c0_4 = arith.constant 0 : index
    %4 = vector.load %arg4[%c0_3, %c0_4] : memref<32x4xf32, #tpu.memory_space<vmem>>, vector<32x4xf32>
    %5 = vector.shape_cast %4 : vector<32x4xf32> to vector<1x32x4xf32>
    %6 = vector.shape_cast %5 : vector<1x32x4xf32> to vector<1x32x4xf32>
    %7 = vector.broadcast %6 : vector<1x32x4xf32> to vector<8x32x4xf32>
    "tpu.trace_start"() <{level = 10 : i32, message = "bfc,bch->bfh"}> : () -> ()
    %cst = arith.constant dense<0.000000e+00> : vector<8x32x256xf32>
    %8 = tpu.matmul %7, %3, %cst {dimension_numbers = #tpu.dot_dimension_numbers<[2], [1], [1], [2], [0, 0, 0, 1, 1, 2], [0], [0]>} : vector<8x32x4xf32>, vector<8x4x256xf32>, vector<8x32x256xf32> -> vector<8x32x256xf32>
    "tpu.trace_stop"() : () -> ()
    %cst_5 = arith.constant 0.000000e+00 : f32
    %9 = vector.broadcast %cst_5 : f32 to vector<8x32x256xf32>
    %10 = arith.maximumf %8, %9 : vector<8x32x256xf32>
    %c0_6 = arith.constant 0 : index
    %c0_7 = arith.constant 0 : index
    %11 = vector.load %arg9[%c0_6, %c0_7] : memref<8x32xf32, #tpu.memory_space<vmem>>, vector<8x32xf32>
    %cst_8 = arith.constant dense<0.000000e+00> : vector<8x32xf32>
    %12 = vector.multi_reduction <add>, %10, %cst_8 [2] : vector<8x32x256xf32> to vector<8x32xf32>
    %13 = arith.addf %11, %12 : vector<8x32xf32>
    %c0_9 = arith.constant 0 : index
    %c0_10 = arith.constant 0 : index
    %14 = vector.load %arg9[%c0_9, %c0_10] : memref<8x32xf32, #tpu.memory_space<vmem>>, vector<8x32xf32>
    tpu.vector_store %arg9[%c0_9, %c0_10], %13 {strides = array<i32>} : memref<8x32xf32, #tpu.memory_space<vmem>>, vector<8x32xf32>,
    %c0_i32_11 = arith.constant 0 : i32
    %15 = arith.cmpi eq, %arg1, %c0_i32_11 : i32
    %16 = arith.extui %15 : i1 to i32
    %c0_i32_12 = arith.constant 0 : i32
    %17 = arith.cmpi ne, %16, %c0_i32_12 : i32
    scf.if %17 {
      %c0_13 = arith.constant 0 : index
      %c0_14 = arith.constant 0 : index
      %18 = vector.load %arg9[%c0_13, %c0_14] : memref<8x32xf32, #tpu.memory_space<vmem>>, vector<8x32xf32>
      %c0_15 = arith.constant 0 : index
      %c0_16 = arith.constant 0 : index
      %19 = vector.load %arg5[%c0_15, %c0_16] : memref<32x128xf32, #tpu.memory_space<vmem>>, vector<32x128xf32>
      %cst_17 = arith.constant dense<0.000000e+00> : vector<8x128xf32>
      %20 = tpu.matmul %18, %19, %cst_17 {dimension_numbers = #tpu.dot_dimension_numbers<[1], [0], [0], [1], [0, 0, 1, 1], [], []>} : vector<8x32xf32>, vector<32x128xf32>, vector<8x128xf32> -> vector<8x128xf32>
      %c0_18 = arith.constant 0 : index
      %c0_19 = arith.constant 0 : index
      %21 = vector.load %arg3[%c0_18, %c0_19] : memref<8x4xf32, #tpu.memory_space<vmem>>, vector<8x4xf32>
      %c0_20 = arith.constant 0 : index
      %c0_21 = arith.constant 0 : index
      %22 = vector.load %arg6[%c0_20, %c0_21] : memref<4x128xf32, #tpu.memory_space<vmem>>, vector<4x128xf32>
      %cst_22 = arith.constant dense<0.000000e+00> : vector<8x128xf32>
      %23 = tpu.matmul %21, %22, %cst_22 {dimension_numbers = #tpu.dot_dimension_numbers<[1], [0], [0], [1], [0, 0, 1, 1], [], []>} : vector<8x4xf32>, vector<4x128xf32>, vector<8x128xf32> -> vector<8x128xf32>
      %24 = arith.addf %20, %23 : vector<8x128xf32>
      %c0_23 = arith.constant 0 : index
      %c0_24 = arith.constant 0 : index
      %25 = vector.load %arg7[%c0_23, %c0_24] : memref<1x128xf32, #tpu.memory_space<vmem>>, vector<1x128xf32>
      %26 = vector.broadcast %25 : vector<1x128xf32> to vector<8x128xf32>
      %27 = arith.addf %24, %26 : vector<8x128xf32>
      %c0_25 = arith.constant 0 : index
      %c0_26 = arith.constant 0 : index
      %28 = vector.load %arg8[%c0_25, %c0_26] : memref<8x128xf32, #tpu.memory_space<vmem>>, vector<8x128xf32>
      tpu.vector_store %arg8[%c0_25, %c0_26], %27 {strides = array<i32>} : memref<8x128xf32, #tpu.memory_space<vmem>>, vector<8x128xf32>,
    } else {
    }
    return
  }
  func.func @transform_0(%arg0: i32, %arg1: i32) -> (i32, i32, i32) {
    %c0_i32 = arith.constant 0 : i32
    %c0_i32_0 = arith.constant 0 : i32
    return %arg0, %c0_i32, %arg1 : i32, i32, i32
  }
  func.func @transform_1(%arg0: i32, %arg1: i32) -> (i32, i32) {
    %c0_i32 = arith.constant 0 : i32
    %c0_i32_0 = arith.constant 0 : i32
    return %arg0, %c0_i32 : i32, i32
  }
  func.func @transform_2(%arg0: i32, %arg1: i32) -> (i32, i32) {
    %c0_i32 = arith.constant 0 : i32
    %c0_i32_0 = arith.constant 0 : i32
    %c0_i32_1 = arith.constant 0 : i32
    return %c0_i32, %c0_i32_0 : i32, i32
  }
  func.func @transform_3(%arg0: i32, %arg1: i32) -> (i32, i32) {
    %c0_i32 = arith.constant 0 : i32
    %c0_i32_0 = arith.constant 0 : i32
    %c0_i32_1 = arith.constant 0 : i32
    return %c0_i32, %c0_i32_0 : i32, i32
  }
  func.func @transform_4(%arg0: i32, %arg1: i32) -> (i32, i32) {
    %c0_i32 = arith.constant 0 : i32
    %c0_i32_0 = arith.constant 0 : i32
    %c0_i32_1 = arith.constant 0 : i32
    return %c0_i32, %c0_i32_0 : i32, i32
  }
  func.func @transform_5(%arg0: i32, %arg1: i32) -> (i32, i32) {
    %c0_i32 = arith.constant 0 : i32
    %c0_i32_0 = arith.constant 0 : i32
    %c0_i32_1 = arith.constant 0 : i32
    return %c0_i32, %c0_i32_0 : i32, i32
  }
  func.func @transform_6(%arg0: i32, %arg1: i32) -> (i32, i32) {
    %c0_i32 = arith.constant 0 : i32
    %c0_i32_0 = arith.constant 0 : i32
    return %arg0, %c0_i32 : i32, i32
  }
}

</mosaic_0001>

<llo_original>
// kernel: tpu_custom_call.1
$region0: #{tpu_custom_call.1}
  #allocation0 [shape = 'u32[]', space=smem, size = 0x4, offset = 0x4, fixed_abs, tag = 'smem constant byte address 0x4 - core index']
  #allocation1 [shape = 'u32[144,128]{1,0:T(1,128)}', space=vmem, size = 0x12000, scoped, tag = 'internal scratch']
  #allocation2 [shape = 'f32[8,32]{1,0:T(8,128)}', space=vmem, size = 0x1000, scoped, tag = 'scratch operand']
  %s0 = inlined_call_operand.hbm [shape: f32[8,4,256], index: 0, kind: input, shape index: {}]
  %s1 = inlined_call_operand.vmem [shape: f32[8,4], index: 1, kind: input, shape index: {}]
  %s2 = inlined_call_operand.vmem [shape: f32[32,4], index: 2, kind: input, shape index: {}]
  %s3 = inlined_call_operand.vmem [shape: f32[32,128], index: 3, kind: input, shape index: {}]
  %s4 = inlined_call_operand.vmem [shape: f32[4,128], index: 4, kind: input, shape index: {}]
  %s5 = inlined_call_operand.vmem [shape: f32[1,128], index: 5, kind: input, shape index: {}]
  %s6 = inlined_call_operand.hbm [shape: f32[8,128], index: 6, kind: output, shape index: {}]
  %s7 = sld [smem:[#allocation0]]
  $region46: #{tpu_custom_call.1} parent=0
    _
  %s9 = ssub.s32 1, %s7
  %s10 = scalar_select 0, %s9, %s7
  $region1: #{tpu_custom_call.1} parent=0
    #allocation3 [shape = 'u8[32768]{0}', space=vmem, size = 0x8000, scoped, tag = 'input window, operand 0, single buffered']
    #allocation4 [shape = 's32[1]{0}', space=sflag, size = 0x4, scoped, tag = 'scoped memory for tpu_custom_call.1']
    #allocation5 [shape = 's32[1]{0}', space=sflag, size = 0x4, scoped, tag = 'scoped memory for tpu_custom_call.1']
    #allocation6 [shape = 'u8[4096]{0}', space=vmem, size = 0x1000, scoped, tag = 'output window, operand 0, single buffered']
    %11 = vsyncpa [#allocation4], 0
    %12 = vsyncpa [#allocation5], 0
    // Predicated region
    $region2: #{tpu_custom_call.1} parent=1 // pred_check
      _
    $region3: #{tpu_custom_call.1} parent=1 // pred_check_branch
      %14 = sbr.rel (0) target = $region5
    $region4: #{tpu_custom_call.1} parent=1 // pred_region
      %s16 = ssub.s32 1024, 1024
      %17 = vsyncadd [#allocation4], %s16
      %s18 = sshll.u32 [#allocation3], 4
      %s19 = int_to_ptr.vmem [resolvable:$true] %s18
      %24 = dma.hbm_to_vmem [thread:$0]  %s0, 1024, %s19, [#allocation4], 128, 128, 8
    $region5: #{tpu_custom_call.1} parent=1 // pred_fallthru
      _
    // Predicated region
    $region6: #{tpu_custom_call.1} parent=1 // pred_check
      _
    $region7: #{tpu_custom_call.1} parent=1 // pred_check_branch
      %26 = sbr.rel (0) target = $region9
    $region8: #{tpu_custom_call.1} parent=1 // pred_region
      _
    $region9: #{tpu_custom_call.1} parent=1 // pred_fallthru
      _
    // Predicated region
    $region10: #{tpu_custom_call.1} parent=1 // pred_check
      _
    $region11: #{tpu_custom_call.1} parent=1 // pred_check_branch
      %28 = sbr.rel (0) target = $region13
    $region12: #{tpu_custom_call.1} parent=1 // pred_region
      _
    $region13: #{tpu_custom_call.1} parent=1 // pred_fallthru
      _
    // Predicated region
    $region14: #{tpu_custom_call.1} parent=1 // pred_check
      _
    $region15: #{tpu_custom_call.1} parent=1 // pred_check_branch
      %30 = sbr.rel (0) target = $region17
    $region16: #{tpu_custom_call.1} parent=1 // pred_region
      _
    $region17: #{tpu_custom_call.1} parent=1 // pred_fallthru
      _
    // Predicated region
    $region18: #{tpu_custom_call.1} parent=1 // pred_check
      _
    $region19: #{tpu_custom_call.1} parent=1 // pred_check_branch
      %32 = sbr.rel (0) target = $region21
    $region20: #{tpu_custom_call.1} parent=1 // pred_region
      _
    $region21: #{tpu_custom_call.1} parent=1 // pred_fallthru
      _
    // Predicated region
    $region22: #{tpu_custom_call.1} parent=1 // pred_check
      _
    $region23: #{tpu_custom_call.1} parent=1 // pred_check_branch
      %34 = sbr.rel (0) target = $region25
    $region24: #{tpu_custom_call.1} parent=1 // pred_region
      _
    $region25: #{tpu_custom_call.1} parent=1 // pred_fallthru
      _
    // Predicated region
    $region26: #{tpu_custom_call.1} parent=1 // pred_check
      _
    $region27: #{tpu_custom_call.1} parent=1 // pred_check_branch
      %36 = sbr.rel (0) target = $region29
    $region28: #{tpu_custom_call.1} parent=1 // pred_region
      %37 = dma.done [#allocation4], 1024
    $region29: #{tpu_custom_call.1} parent=1 // pred_fallthru
      _
    %p38 = scmp.eq.s32.totalorder 0, 0
    // Predicated region
    $region30: #{tpu_custom_call.1} parent=1 // pred_check
      %p39 = pneg %p38
    $region31: #{tpu_custom_call.1} parent=1 // pred_check_branch
      %41 = sbr.rel (%p39) target = $region33
    $region32: #{tpu_custom_call.1} parent=1 // pred_region
      %vm42 = vcmask 261120
      %43 = vst.msk [vmem:[#allocation2] sm:$0xff] %vm42, 0.0
    $region33: #{tpu_custom_call.1} parent=1 // pred_fallthru
      _
    %v44 = vld [vmem:[#allocation3] sm:$0xff]
    %v45 = vld [vmem:[#allocation3 + $0x8] sm:$0xff]
    %v46 = vld [vmem:[#allocation3 + $0x10] sm:$0xff]
    %v47 = vld [vmem:[#allocation3 + $0x18] sm:$0xff]
    %v48 = vld [vmem:[#allocation3 + $0x20] sm:$0xff]
    %v49 = vld [vmem:[#allocation3 + $0x28] sm:$0xff]
    %v50 = vld [vmem:[#allocation3 + $0x30] sm:$0xff]
    %v51 = vld [vmem:[#allocation3 + $0x38] sm:$0xff]
    %v52 = vld [vmem:[%s2] sm:$0xff]
    %v53 = vld [vmem:[%s2 + $0x8] sm:$0xff]
    %v54 = vld [vmem:[%s2 + $0x10] sm:$0xff]
    %v55 = vld [vmem:[%s2 + $0x18] sm:$0xff]
    %v57 = vcombine.high %v44, %v44
    %vm58 = vcmask 31744
    %v60 = vsel %vm58, %v52, 0
    %v63 = vsel %vm58, %v53, 0
    %v66 = vsel %vm58, %v54, 0
    %v69 = vsel %vm58, %v55, 0
    %vm71 = vcmask 1043456
    %v72 = vsel %vm71, %v44, 0
    %v74 = vsel %vm71, %v57, 0
    %76 = vmatprep.subr.mxu0 %v74
    %77 = vmatpush1.msra.mxu0 %v72
    %78 = vmatprep.subr.mxu0 0.0
    %79 = vmatpush1.msra.mxu0 0.0
    %80 = vmatprep.subr.mxu0 0.0
    %81 = vmatpush1.msra.mxu0 0.0
    %82 = vmatprep.subr.mxu0 0.0
    %83 = vmatpush1.msra.mxu0 0.0
    %84 = vmatprep.subr.mxu0 0.0
    %85 = vmatpush1.msra.mxu0 0.0
    %86 = vmatprep.subr.mxu0 0.0
    %87 = vmatpush1.msra.mxu0 0.0
    %88 = vmatprep.subr.mxu0 0.0
    %89 = vmatpush1.msra.mxu0 0.0
    %90 = vmatprep.subr.mxu0 0.0
    %91 = vmatpush1.msra.mxu0 0.0
    %92 = vmatprep.subr.mxu0 0.0
    %93 = vmatpush1.msra.mxu0 0.0
    %94 = vmatprep.subr.mxu0 0.0
    %95 = vmatpush1.msra.mxu0 0.0
    %96 = vmatprep.subr.mxu0 0.0
    %97 = vmatpush1.msra.mxu0 0.0
    %98 = vmatprep.subr.mxu0 0.0
    %99 = vmatpush1.msra.mxu0 0.0
    %100 = vmatprep.subr.mxu0 0.0
    %101 = vmatpush1.msra.mxu0 0.0
    %102 = vmatprep.subr.mxu0 0.0
    %103 = vmatpush1.msra.mxu0 0.0
    %104 = vmatprep.subr.mxu0 0.0
    %105 = vmatpush1.msra.mxu0 0.0
    %106 = vmatprep.subr.mxu0 0.0
    %107 = vmatpush1.msra.mxu0 0.0
    %108 = vmatprep.subr.mxu0 0.0
    %109 = vmatpush1.msra.mxu0 0.0
    %110 = vmatprep.subr.mxu0 0.0
    %111 = vmatpush1.msra.mxu0 0.0
    %112 = vmatprep.subr.mxu0 0.0
    %113 = vmatpush1.msra.mxu0 0.0
    %114 = vmatprep.subr.mxu0 0.0
    %115 = vmatpush1.msra.mxu0 0.0
    %116 = vmatprep.subr.mxu0 0.0
    %117 = vmatpush1.msra.mxu0 0.0
    %118 = vmatprep.subr.mxu0 0.0
    %119 = vmatpush1.msra.mxu0 0.0
    %120 = vmatprep.subr.mxu0 0.0
    %121 = vmatpush1.msra.mxu0 0.0
    %122 = vmatprep.subr.mxu0 0.0
    %123 = vmatpush1.msra.mxu0 0.0
    %124 = vmatprep.subr.mxu0 0.0
    %125 = vmatpush1.msra.mxu0 0.0
    %126 = vmatprep.subr.mxu0 0.0
    %127 = vmatpush1.msra.mxu0 0.0
    %128 = vmatprep.subr.mxu0 0.0
    %129 = vmatpush1.msra.mxu0 0.0
    %130 = vmatprep.subr.mxu0 0.0
    %131 = vmatpush1.msra.mxu0 0.0
    %132 = vmatprep.subr.mxu0 0.0
    %133 = vmatpush1.msra.mxu0 0.0
    %134 = vmatprep.subr.mxu0 0.0
    %135 = vmatpush1.msra.mxu0 0.0
    %136 = vmatprep.subr.mxu0 0.0
    %137 = vmatpush1.msra.mxu0 0.0
    %138 = vmatprep.subr.mxu0 0.0
    %139 = vmatpush1.msra.mxu0 0.0
    %140 = vmatprep.mubr.f32.mxu0 0.0
    %141 = vmatmul.mubr.f32.gmra.mrb[0].mxu0 %v60
    %v142 = vpop.f32.mrb[0].mxu0
    %v143 = vadd.f32 0.0, %v142
    %v144 = vpop.f32.mrb[0].mxu0
    %v145 = vadd.f32 0.0, %v144
    %146 = vmatprep.mubr.f32.mxu0 0.0
    %147 = vmatmul.mubr.f32.gmra.mrb[0].mxu0 %v63
    %v148 = vpop.f32.mrb[0].mxu0
    %v149 = vadd.f32 0.0, %v148
    %v150 = vpop.f32.mrb[0].mxu0
    %v151 = vadd.f32 0.0, %v150
    %152 = vmatprep.mubr.f32.mxu0 0.0
    %153 = vmatmul.mubr.f32.gmra.mrb[0].mxu0 %v66
    %v154 = vpop.f32.mrb[0].mxu0
    %v155 = vadd.f32 0.0, %v154
    %v156 = vpop.f32.mrb[0].mxu0
    %v157 = vadd.f32 0.0, %v156
    %158 = vmatprep.mubr.f32.mxu0 0.0
    %159 = vmatmul.mubr.f32.gmra.mrb[0].mxu0 %v69
    %v160 = vpop.f32.mrb[0].mxu0
    %v161 = vadd.f32 0.0, %v160
    %v162 = vpop.f32.mrb[0].mxu0
    %v163 = vadd.f32 0.0, %v162
    %164 = vdwg.mxu0
    %v166 = vcombine.high %v45, %v45
    %v167 = vsel %vm71, %v45, 0
    %v169 = vsel %vm71, %v166, 0
    %171 = vmatprep.subr.mxu0 %v169
    %172 = vmatpush1.msra.mxu0 %v167
    %173 = vmatprep.subr.mxu0 0.0
    %174 = vmatpush1.msra.mxu0 0.0
    %175 = vmatprep.subr.mxu0 0.0
    %176 = vmatpush1.msra.mxu0 0.0
    %177 = vmatprep.subr.mxu0 0.0
    %178 = vmatpush1.msra.mxu0 0.0
    %179 = vmatprep.subr.mxu0 0.0
    %180 = vmatpush1.msra.mxu0 0.0
    %181 = vmatprep.subr.mxu0 0.0
    %182 = vmatpush1.msra.mxu0 0.0
    %183 = vmatprep.subr.mxu0 0.0
    %184 = vmatpush1.msra.mxu0 0.0
    %185 = vmatprep.subr.mxu0 0.0
    %186 = vmatpush1.msra.mxu0 0.0
    %187 = vmatprep.subr.mxu0 0.0
    %188 = vmatpush1.msra.mxu0 0.0
    %189 = vmatprep.subr.mxu0 0.0
    %190 = vmatpush1.msra.mxu0 0.0
    %191 = vmatprep.subr.mxu0 0.0
    %192 = vmatpush1.msra.mxu0 0.0
    %193 = vmatprep.subr.mxu0 0.0
    %194 = vmatpush1.msra.mxu0 0.0
    %195 = vmatprep.subr.mxu0 0.0
    %196 = vmatpush1.msra.mxu0 0.0
    %197 = vmatprep.subr.mxu0 0.0
    %198 = vmatpush1.msra.mxu0 0.0
    %199 = vmatprep.subr.mxu0 0.0
    %200 = vmatpush1.msra.mxu0 0.0
    %201 = vmatprep.subr.mxu0 0.0
    %202 = vmatpush1.msra.mxu0 0.0
    %203 = vmatprep.subr.mxu0 0.0
    %204 = vmatpush1.msra.mxu0 0.0
    %205 = vmatprep.subr.mxu0 0.0
    %206 = vmatpush1.msra.mxu0 0.0
    %207 = vmatprep.subr.mxu0 0.0
    %208 = vmatpush1.msra.mxu0 0.0
    %209 = vmatprep.subr.mxu0 0.0
    %210 = vmatpush1.msra.mxu0 0.0
    %211 = vmatprep.subr.mxu0 0.0
    %212 = vmatpush1.msra.mxu0 0.0
    %213 = vmatprep.subr.mxu0 0.0
    %214 = vmatpush1.msra.mxu0 0.0
    %215 = vmatprep.subr.mxu0 0.0
    %216 = vmatpush1.msra.mxu0 0.0
    %217 = vmatprep.subr.mxu0 0.0
    %218 = vmatpush1.msra.mxu0 0.0
    %219 = vmatprep.subr.mxu0 0.0
    %220 = vmatpush1.msra.mxu0 0.0
    %221 = vmatprep.subr.mxu0 0.0
    %222 = vmatpush1.msra.mxu0 0.0
    %223 = vmatprep.subr.mxu0 0.0
    %224 = vmatpush1.msra.mxu0 0.0
    %225 = vmatprep.subr.mxu0 0.0
    %226 = vmatpush1.msra.mxu0 0.0
    %227 = vmatprep.subr.mxu0 0.0
    %228 = vmatpush1.msra.mxu0 0.0
    %229 = vmatprep.subr.mxu0 0.0
    %230 = vmatpush1.msra.mxu0 0.0
    %231 = vmatprep.subr.mxu0 0.0
    %232 = vmatpush1.msra.mxu0 0.0
    %233 = vmatprep.subr.mxu0 0.0
    %234 = vmatpush1.msra.mxu0 0.0
    %235 = vmatprep.mubr.f32.mxu0 0.0
    %236 = vmatmul.mubr.f32.gmra.mrb[0].mxu0 %v60
    %v237 = vpop.f32.mrb[0].mxu0
    %v238 = vadd.f32 0.0, %v237
    %v239 = vpop.f32.mrb[0].mxu0
    %v240 = vadd.f32 0.0, %v239
    %241 = vmatprep.mubr.f32.mxu0 0.0
    %242 = vmatmul.mubr.f32.gmra.mrb[0].mxu0 %v63
    %v243 = vpop.f32.mrb[0].mxu0
    %v244 = vadd.f32 0.0, %v243
    %v245 = vpop.f32.mrb[0].mxu0
    %v246 = vadd.f32 0.0, %v245
    %247 = vmatprep.mubr.f32.mxu0 0.0
    %248 = vmatmul.mubr.f32.gmra.mrb[0].mxu0 %v66
    %v249 = vpop.f32.mrb[0].mxu0
    %v250 = vadd.f32 0.0, %v249
    %v251 = vpop.f32.mrb[0].mxu0
    %v252 = vadd.f32 0.0, %v251
    %253 = vmatprep.mubr.f32.mxu0 0.0
    %254 = vmatmul.mubr.f32.gmra.mrb[0].mxu0 %v69
    %v255 = vpop.f32.mrb[0].mxu0
    %v256 = vadd.f32 0.0, %v255
    %v257 = vpop.f32.mrb[0].mxu0
    %v258 = vadd.f32 0.0, %v257
    %259 = vdwg.mxu0
    %v261 = vcombine.high %v46, %v46
    %v262 = vsel %vm71, %v46, 0
    %v264 = vsel %vm71, %v261, 0
    %266 = vmatprep.subr.mxu0 %v264
    %267 = vmatpush1.msra.mxu0 %v262
    %268 = vmatprep.subr.mxu0 0.0
    %269 = vmatpush1.msra.mxu0 0.0
    %270 = vmatprep.subr.mxu0 0.0
    %271 = vmatpush1.msra.mxu0 0.0
    %272 = vmatprep.subr.mxu0 0.0
    %273 = vmatpush1.msra.mxu0 0.0
    %274 = vmatprep.subr.mxu0 0.0
    %275 = vmatpush1.msra.mxu0 0.0
    %276 = vmatprep.subr.mxu0 0.0
    %277 = vmatpush1.msra.mxu0 0.0
    %278 = vmatprep.subr.mxu0 0.0
    %279 = vmatpush1.msra.mxu0 0.0
    %280 = vmatprep.subr.mxu0 0.0
    %281 = vmatpush1.msra.mxu0 0.0
    %282 = vmatprep.subr.mxu0 0.0
    %283 = vmatpush1.msra.mxu0 0.0
    %284 = vmatprep.subr.mxu0 0.0
    %285 = vmatpush1.msra.mxu0 0.0
    %286 = vmatprep.subr.mxu0 0.0
    %287 = vmatpush1.msra.mxu0 0.0
    %288 = vmatprep.subr.mxu0 0.0
    %289 = vmatpush1.msra.mxu0 0.0
    %290 = vmatprep.subr.mxu0 0.0
    %291 = vmatpush1.msra.mxu0 0.0
    %292 = vmatprep.subr.mxu0 0.0
    %293 = vmatpush1.msra.mxu0 0.0
    %294 = vmatprep.subr.mxu0 0.0
    %295 = vmatpush1.msra.mxu0 0.0
    %296 = vmatprep.subr.mxu0 0.0
    %297 = vmatpush1.msra.mxu0 0.0
    %298 = vmatprep.subr.mxu0 0.0
    %299 = vmatpush1.msra.mxu0 0.0
    %300 = vmatprep.subr.mxu0 0.0
    %301 = vmatpush1.msra.mxu0 0.0
    %302 = vmatprep.subr.mxu0 0.0
    %303 = vmatpush1.msra.mxu0 0.0
    %304 = vmatprep.subr.mxu0 0.0
    %305 = vmatpush1.msra.mxu0 0.0
    %306 = vmatprep.subr.mxu0 0.0
    %307 = vmatpush1.msra.mxu0 0.0
    %308 = vmatprep.subr.mxu0 0.0
    %309 = vmatpush1.msra.mxu0 0.0
    %310 = vmatprep.subr.mxu0 0.0
    %311 = vmatpush1.msra.mxu0 0.0
    %312 = vmatprep.subr.mxu0 0.0
    %313 = vmatpush1.msra.mxu0 0.0
    %314 = vmatprep.subr.mxu0 0.0
    %315 = vmatpush1.msra.mxu0 0.0
    %316 = vmatprep.subr.mxu0 0.0
    %317 = vmatpush1.msra.mxu0 0.0
    %318 = vmatprep.subr.mxu0 0.0
    %319 = vmatpush1.msra.mxu0 0.0
    %320 = vmatprep.subr.mxu0 0.0
    %321 = vmatpush1.msra.mxu0 0.0
    %322 = vmatprep.subr.mxu0 0.0
    %323 = vmatpush1.msra.mxu0 0.0
    %324 = vmatprep.subr.mxu0 0.0
    %325 = vmatpush1.msra.mxu0 0.0
    %326 = vmatprep.subr.mxu0 0.0
    %327 = vmatpush1.msra.mxu0 0.0
    %328 = vmatprep.subr.mxu0 0.0
    %329 = vmatpush1.msra.mxu0 0.0
    %330 = vmatprep.mubr.f32.mxu0 0.0
    %331 = vmatmul.mubr.f32.gmra.mrb[0].mxu0 %v60
    %v332 = vpop.f32.mrb[0].mxu0
    %v333 = vadd.f32 0.0, %v332
    %v334 = vpop.f32.mrb[0].mxu0
    %v335 = vadd.f32 0.0, %v334
    %336 = vmatprep.mubr.f32.mxu0 0.0
    %337 = vmatmul.mubr.f32.gmra.mrb[0].mxu0 %v63
    %v338 = vpop.f32.mrb[0].mxu0
    %v339 = vadd.f32 0.0, %v338
    %v340 = vpop.f32.mrb[0].mxu0
    %v341 = vadd.f32 0.0, %v340
    %342 = vmatprep.mubr.f32.mxu0 0.0
    %343 = vmatmul.mubr.f32.gmra.mrb[0].mxu0 %v66
    %v344 = vpop.f32.mrb[0].mxu0
    %v345 = vadd.f32 0.0, %v344
    %v346 = vpop.f32.mrb[0].mxu0
    %v347 = vadd.f32 0.0, %v346
    %348 = vmatprep.mubr.f32.mxu0 0.0
    %349 = vmatmul.mubr.f32.gmra.mrb[0].mxu0 %v69
    %v350 = vpop.f32.mrb[0].mxu0
    %v351 = vadd.f32 0.0, %v350
    %v352 = vpop.f32.mrb[0].mxu0
    %v353 = vadd.f32 0.0, %v352
    %354 = vdwg.mxu0
    %v356 = vcombine.high %v47, %v47
    %v357 = vsel %vm71, %v47, 0
    %v359 = vsel %vm71, %v356, 0
    %361 = vmatprep.subr.mxu0 %v359
    %362 = vmatpush1.msra.mxu0 %v357
    %363 = vmatprep.subr.mxu0 0.0
    %364 = vmatpush1.msra.mxu0 0.0
    %365 = vmatprep.subr.mxu0 0.0
    %366 = vmatpush1.msra.mxu0 0.0
    %367 = vmatprep.subr.mxu0 0.0
    %368 = vmatpush1.msra.mxu0 0.0
    %369 = vmatprep.subr.mxu0 0.0
    %370 = vmatpush1.msra.mxu0 0.0
    %371 = vmatprep.subr.mxu0 0.0
    %372 = vmatpush1.msra.mxu0 0.0
    %373 = vmatprep.subr.mxu0 0.0
    %374 = vmatpush1.msra.mxu0 0.0
    %375 = vmatprep.subr.mxu0 0.0
    %376 = vmatpush1.msra.mxu0 0.0
    %377 = vmatprep.subr.mxu0 0.0
    %378 = vmatpush1.msra.mxu0 0.0
    %379 = vmatprep.subr.mxu0 0.0
    %380 = vmatpush1.msra.mxu0 0.0
    %381 = vmatprep.subr.mxu0 0.0
    %382 = vmatpush1.msra.mxu0 0.0
    %383 = vmatprep.subr.mxu0 0.0
    %384 = vmatpush1.msra.mxu0 0.0
    %385 = vmatprep.subr.mxu0 0.0
    %386 = vmatpush1.msra.mxu0 0.0
    %387 = vmatprep.subr.mxu0 0.0
    %388 = vmatpush1.msra.mxu0 0.0
    %389 = vmatprep.subr.mxu0 0.0
    %390 = vmatpush1.msra.mxu0 0.0
    %391 = vmatprep.subr.mxu0 0.0
    %392 = vmatpush1.msra.mxu0 0.0
    %393 = vmatprep.subr.mxu0 0.0
    %394 = vmatpush1.msra.mxu0 0.0
    %395 = vmatprep.subr.mxu0 0.0
    %396 = vmatpush1.msra.mxu0 0.0
    %397 = vmatprep.subr.mxu0 0.0
    %398 = vmatpush1.msra.mxu0 0.0
    %399 = vmatprep.subr.mxu0 0.0
    %400 = vmatpush1.msra.mxu0 0.0
    %401 = vmatprep.subr.mxu0 0.0
    %402 = vmatpush1.msra.mxu0 0.0
    %403 = vmatprep.subr.mxu0 0.0
    %404 = vmatpush1.msra.mxu0 0.0
    %405 = vmatprep.subr.mxu0 0.0
    %406 = vmatpush1.msra.mxu0 0.0
    %407 = vmatprep.subr.mxu0 0.0
    %408 = vmatpush1.msra.mxu0 0.0
    %409 = vmatprep.subr.mxu0 0.0
    %410 = vmatpush1.msra.mxu0 0.0
    %411 = vmatprep.subr.mxu0 0.0
    %412 = vmatpush1.msra.mxu0 0.0
    %413 = vmatprep.subr.mxu0 0.0
    %414 = vmatpush1.msra.mxu0 0.0
    %415 = vmatprep.subr.mxu0 0.0
    %416 = vmatpush1.msra.mxu0 0.0
    %417 = vmatprep.subr.mxu0 0.0
    %418 = vmatpush1.msra.mxu0 0.0
    %419 = vmatprep.subr.mxu0 0.0
    %420 = vmatpush1.msra.mxu0 0.0
    %421 = vmatprep.subr.mxu0 0.0
    %422 = vmatpush1.msra.mxu0 0.0
    %423 = vmatprep.subr.mxu0 0.0
    %424 = vmatpush1.msra.mxu0 0.0
    %425 = vmatprep.mubr.f32.mxu0 0.0
    %426 = vmatmul.mubr.f32.gmra.mrb[0].mxu0 %v60
    %v427 = vpop.f32.mrb[0].mxu0
    %v428 = vadd.f32 0.0, %v427
    %v429 = vpop.f32.mrb[0].mxu0
    %v430 = vadd.f32 0.0, %v429
    %431 = vmatprep.mubr.f32.mxu0 0.0
    %432 = vmatmul.mubr.f32.gmra.mrb[0].mxu0 %v63
    %v433 = vpop.f32.mrb[0].mxu0
    %v434 = vadd.f32 0.0, %v433
    %v435 = vpop.f32.mrb[0].mxu0
    %v436 = vadd.f32 0.0, %v435
    %437 = vmatprep.mubr.f32.mxu0 0.0
    %438 = vmatmul.mubr.f32.gmra.mrb[0].mxu0 %v66
    %v439 = vpop.f32.mrb[0].mxu0
    %v440 = vadd.f32 0.0, %v439
    %v441 = vpop.f32.mrb[0].mxu0
    %v442 = vadd.f32 0.0, %v441
    %443 = vmatprep.mubr.f32.mxu0 0.0
    %444 = vmatmul.mubr.f32.gmra.mrb[0].mxu0 %v69
    %v445 = vpop.f32.mrb[0].mxu0
    %v446 = vadd.f32 0.0, %v445
    %v447 = vpop.f32.mrb[0].mxu0
    %v448 = vadd.f32 0.0, %v447
    %449 = vdwg.mxu0
    %v451 = vcombine.high %v48, %v48
    %v452 = vsel %vm71, %v48, 0
    %v454 = vsel %vm71, %v451, 0
    %456 = vmatprep.subr.mxu0 %v454
    %457 = vmatpush1.msra.mxu0 %v452
    %458 = vmatprep.subr.mxu0 0.0
    %459 = vmatpush1.msra.mxu0 0.0
    %460 = vmatprep.subr.mxu0 0.0
    %461 = vmatpush1.msra.mxu0 0.0
    %462 = vmatprep.subr.mxu0 0.0
    %463 = vmatpush1.msra.mxu0 0.0
    %464 = vmatprep.subr.mxu0 0.0
    %465 = vmatpush1.msra.mxu0 0.0
    %466 = vmatprep.subr.mxu0 0.0
    %467 = vmatpush1.msra.mxu0 0.0
    %468 = vmatprep.subr.mxu0 0.0
    %469 = vmatpush1.msra.mxu0 0.0
    %470 = vmatprep.subr.mxu0 0.0
    %471 = vmatpush1.msra.mxu0 0.0
    %472 = vmatprep.subr.mxu0 0.0
    %473 = vmatpush1.msra.mxu0 0.0
    %474 = vmatprep.subr.mxu0 0.0
    %475 = vmatpush1.msra.mxu0 0.0
    %476 = vmatprep.subr.mxu0 0.0
    %477 = vmatpush1.msra.mxu0 0.0
    %478 = vmatprep.subr.mxu0 0.0
    %479 = vmatpush1.msra.mxu0 0.0
    %480 = vmatprep.subr.mxu0 0.0
    %481 = vmatpush1.msra.mxu0 0.0
    %482 = vmatprep.subr.mxu0 0.0
    %483 = vmatpush1.msra.mxu0 0.0
    %484 = vmatprep.subr.mxu0 0.0
    %485 = vmatpush1.msra.mxu0 0.0
    %486 = vmatprep.subr.mxu0 0.0
    %487 = vmatpush1.msra.mxu0 0.0
    %488 = vmatprep.subr.mxu0 0.0
    %489 = vmatpush1.msra.mxu0 0.0
    %490 = vmatprep.subr.mxu0 0.0
    %491 = vmatpush1.msra.mxu0 0.0
    %492 = vmatprep.subr.mxu0 0.0
    %493 = vmatpush1.msra.mxu0 0.0
    %494 = vmatprep.subr.mxu0 0.0
    %495 = vmatpush1.msra.mxu0 0.0
    %496 = vmatprep.subr.mxu0 0.0
    %497 = vmatpush1.msra.mxu0 0.0
    %498 = vmatprep.subr.mxu0 0.0
    %499 = vmatpush1.msra.mxu0 0.0
    %500 = vmatprep.subr.mxu0 0.0
    %501 = vmatpush1.msra.mxu0 0.0
    %502 = vmatprep.subr.mxu0 0.0
    %503 = vmatpush1.msra.mxu0 0.0
    %504 = vmatprep.subr.mxu0 0.0
    %505 = vmatpush1.msra.mxu0 0.0
    %506 = vmatprep.subr.mxu0 0.0
    %507 = vmatpush1.msra.mxu0 0.0
    %508 = vmatprep.subr.mxu0 0.0
    %509 = vmatpush1.msra.mxu0 0.0
    %510 = vmatprep.subr.mxu0 0.0
    %511 = vmatpush1.msra.mxu0 0.0
    %512 = vmatprep.subr.mxu0 0.0
    %513 = vmatpush1.msra.mxu0 0.0
    %514 = vmatprep.subr.mxu0 0.0
    %515 = vmatpush1.msra.mxu0 0.0
    %516 = vmatprep.subr.mxu0 0.0
    %517 = vmatpush1.msra.mxu0 0.0
    %518 = vmatprep.subr.mxu0 0.0
    %519 = vmatpush1.msra.mxu0 0.0
    %520 = vmatprep.mubr.f32.mxu0 0.0
    %521 = vmatmul.mubr.f32.gmra.mrb[0].mxu0 %v60
    %v522 = vpop.f32.mrb[0].mxu0
    %v523 = vadd.f32 0.0, %v522
    %v524 = vpop.f32.mrb[0].mxu0
    %v525 = vadd.f32 0.0, %v524
    %526 = vmatprep.mubr.f32.mxu0 0.0
    %527 = vmatmul.mubr.f32.gmra.mrb[0].mxu0 %v63
    %v528 = vpop.f32.mrb[0].mxu0
    %v529 = vadd.f32 0.0, %v528
    %v530 = vpop.f32.mrb[0].mxu0
    %v531 = vadd.f32 0.0, %v530
    %532 = vmatprep.mubr.f32.mxu0 0.0
    %533 = vmatmul.mubr.f32.gmra.mrb[0].mxu0 %v66
    %v534 = vpop.f32.mrb[0].mxu0
    %v535 = vadd.f32 0.0, %v534
    %v536 = vpop.f32.mrb[0].mxu0
    %v537 = vadd.f32 0.0, %v536
    %538 = vmatprep.mubr.f32.mxu0 0.0
    %539 = vmatmul.mubr.f32.gmra.mrb[0].mxu0 %v69
    %v540 = vpop.f32.mrb[0].mxu0
    %v541 = vadd.f32 0.0, %v540
    %v542 = vpop.f32.mrb[0].mxu0
    %v543 = vadd.f32 0.0, %v542
    %544 = vdwg.mxu0
    %v546 = vcombine.high %v49, %v49
    %v547 = vsel %vm71, %v49, 0
    %v549 = vsel %vm71, %v546, 0
    %551 = vmatprep.subr.mxu0 %v549
    %552 = vmatpush1.msra.mxu0 %v547
    %553 = vmatprep.subr.mxu0 0.0
    %554 = vmatpush1.msra.mxu0 0.0
    %555 = vmatprep.subr.mxu0 0.0
    %556 = vmatpush1.msra.mxu0 0.0
    %557 = vmatprep.subr.mxu0 0.0
    %558 = vmatpush1.msra.mxu0 0.0
    %559 = vmatprep.subr.mxu0 0.0
    %560 = vmatpush1.msra.mxu0 0.0
    %561 = vmatprep.subr.mxu0 0.0
    %562 = vmatpush1.msra.mxu0 0.0
    %563 = vmatprep.subr.mxu0 0.0
    %564 = vmatpush1.msra.mxu0 0.0
    %565 = vmatprep.subr.mxu0 0.0
    %566 = vmatpush1.msra.mxu0 0.0
    %567 = vmatprep.subr.mxu0 0.0
    %568 = vmatpush1.msra.mxu0 0.0
    %569 = vmatprep.subr.mxu0 0.0
    %570 = vmatpush1.msra.mxu0 0.0
    %571 = vmatprep.subr.mxu0 0.0
    %572 = vmatpush1.msra.mxu0 0.0
    %573 = vmatprep.subr.mxu0 0.0
    %574 = vmatpush1.msra.mxu0 0.0
    %575 = vmatprep.subr.mxu0 0.0
    %576 = vmatpush1.msra.mxu0 0.0
    %577 = vmatprep.subr.mxu0 0.0
    %578 = vmatpush1.msra.mxu0 0.0
    %579 = vmatprep.subr.mxu0 0.0
    %580 = vmatpush1.msra.mxu0 0.0
    %581 = vmatprep.subr.mxu0 0.0
    %582 = vmatpush1.msra.mxu0 0.0
    %583 = vmatprep.subr.mxu0 0.0
    %584 = vmatpush1.msra.mxu0 0.0
    %585 = vmatprep.subr.mxu0 0.0
    %586 = vmatpush1.msra.mxu0 0.0
    %587 = vmatprep.subr.mxu0 0.0
    %588 = vmatpush1.msra.mxu0 0.0
    %589 = vmatprep.subr.mxu0 0.0
    %590 = vmatpush1.msra.mxu0 0.0
    %591 = vmatprep.subr.mxu0 0.0
    %592 = vmatpush1.msra.mxu0 0.0
    %593 = vmatprep.subr.mxu0 0.0
    %594 = vmatpush1.msra.mxu0 0.0
    %595 = vmatprep.subr.mxu0 0.0
    %596 = vmatpush1.msra.mxu0 0.0
    %597 = vmatprep.subr.mxu0 0.0
    %598 = vmatpush1.msra.mxu0 0.0
    %599 = vmatprep.subr.mxu0 0.0
    %600 = vmatpush1.msra.mxu0 0.0
    %601 = vmatprep.subr.mxu0 0.0
    %602 = vmatpush1.msra.mxu0 0.0
    %603 = vmatprep.subr.mxu0 0.0
    %604 = vmatpush1.msra.mxu0 0.0
    %605 = vmatprep.subr.mxu0 0.0
    %606 = vmatpush1.msra.mxu0 0.0
    %607 = vmatprep.subr.mxu0 0.0
    %608 = vmatpush1.msra.mxu0 0.0
    %609 = vmatprep.subr.mxu0 0.0
    %610 = vmatpush1.msra.mxu0 0.0
    %611 = vmatprep.subr.mxu0 0.0
    %612 = vmatpush1.msra.mxu0 0.0
    %613 = vmatprep.subr.mxu0 0.0
    %614 = vmatpush1.msra.mxu0 0.0
    %615 = vmatprep.mubr.f32.mxu0 0.0
    %616 = vmatmul.mubr.f32.gmra.mrb[0].mxu0 %v60
    %v617 = vpop.f32.mrb[0].mxu0
    %v618 = vadd.f32 0.0, %v617
    %v619 = vpop.f32.mrb[0].mxu0
    %v620 = vadd.f32 0.0, %v619
    %621 = vmatprep.mubr.f32.mxu0 0.0
    %622 = vmatmul.mubr.f32.gmra.mrb[0].mxu0 %v63
    %v623 = vpop.f32.mrb[0].mxu0
    %v624 = vadd.f32 0.0, %v623
    %v625 = vpop.f32.mrb[0].mxu0
    %v626 = vadd.f32 0.0, %v625
    %627 = vmatprep.mubr.f32.mxu0 0.0
    %628 = vmatmul.mubr.f32.gmra.mrb[0].mxu0 %v66
    %v629 = vpop.f32.mrb[0].mxu0
    %v630 = vadd.f32 0.0, %v629
    %v631 = vpop.f32.mrb[0].mxu0
    %v632 = vadd.f32 0.0, %v631
    %633 = vmatprep.mubr.f32.mxu0 0.0
    %634 = vmatmul.mubr.f32.gmra.mrb[0].mxu0 %v69
    %v635 = vpop.f32.mrb[0].mxu0
    %v636 = vadd.f32 0.0, %v635
    %v637 = vpop.f32.mrb[0].mxu0
    %v638 = vadd.f32 0.0, %v637
    %639 = vdwg.mxu0
    %v641 = vcombine.high %v50, %v50
    %v642 = vsel %vm71, %v50, 0
    %v644 = vsel %vm71, %v641, 0
    %646 = vmatprep.subr.mxu0 %v644
    %647 = vmatpush1.msra.mxu0 %v642
    %648 = vmatprep.subr.mxu0 0.0
    %649 = vmatpush1.msra.mxu0 0.0
    %650 = vmatprep.subr.mxu0 0.0
    %651 = vmatpush1.msra.mxu0 0.0
    %652 = vmatprep.subr.mxu0 0.0
    %653 = vmatpush1.msra.mxu0 0.0
    %654 = vmatprep.subr.mxu0 0.0
    %655 = vmatpush1.msra.mxu0 0.0
    %656 = vmatprep.subr.mxu0 0.0
    %657 = vmatpush1.msra.mxu0 0.0
    %658 = vmatprep.subr.mxu0 0.0
    %659 = vmatpush1.msra.mxu0 0.0
    %660 = vmatprep.subr.mxu0 0.0
    %661 = vmatpush1.msra.mxu0 0.0
    %662 = vmatprep.subr.mxu0 0.0
    %663 = vmatpush1.msra.mxu0 0.0
    %664 = vmatprep.subr.mxu0 0.0
    %665 = vmatpush1.msra.mxu0 0.0
    %666 = vmatprep.subr.mxu0 0.0
    %667 = vmatpush1.msra.mxu0 0.0
    %668 = vmatprep.subr.mxu0 0.0
    %669 = vmatpush1.msra.mxu0 0.0
    %670 = vmatprep.subr.mxu0 0.0
    %671 = vmatpush1.msra.mxu0 0.0
    %672 = vmatprep.subr.mxu0 0.0
    %673 = vmatpush1.msra.mxu0 0.0
    %674 = vmatprep.subr.mxu0 0.0
    %675 = vmatpush1.msra.mxu0 0.0
    %676 = vmatprep.subr.mxu0 0.0
    %677 = vmatpush1.msra.mxu0 0.0
    %678 = vmatprep.subr.mxu0 0.0
    %679 = vmatpush1.msra.mxu0 0.0
    %680 = vmatprep.subr.mxu0 0.0
    %681 = vmatpush1.msra.mxu0 0.0
    %682 = vmatprep.subr.mxu0 0.0
    %683 = vmatpush1.msra.mxu0 0.0
    %684 = vmatprep.subr.mxu0 0.0
    %685 = vmatpush1.msra.mxu0 0.0
    %686 = vmatprep.subr.mxu0 0.0
    %687 = vmatpush1.msra.mxu0 0.0
    %688 = vmatprep.subr.mxu0 0.0
    %689 = vmatpush1.msra.mxu0 0.0
    %690 = vmatprep.subr.mxu0 0.0
    %691 = vmatpush1.msra.mxu0 0.0
    %692 = vmatprep.subr.mxu0 0.0
    %693 = vmatpush1.msra.mxu0 0.0
    %694 = vmatprep.subr.mxu0 0.0
    %695 = vmatpush1.msra.mxu0 0.0
    %696 = vmatprep.subr.mxu0 0.0
    %697 = vmatpush1.msra.mxu0 0.0
    %698 = vmatprep.subr.mxu0 0.0
    %699 = vmatpush1.msra.mxu0 0.0
    %700 = vmatprep.subr.mxu0 0.0
    %701 = vmatpush1.msra.mxu0 0.0
    %702 = vmatprep.subr.mxu0 0.0
    %703 = vmatpush1.msra.mxu0 0.0
    %704 = vmatprep.subr.mxu0 0.0
    %705 = vmatpush1.msra.mxu0 0.0
    %706 = vmatprep.subr.mxu0 0.0
    %707 = vmatpush1.msra.mxu0 0.0
    %708 = vmatprep.subr.mxu0 0.0
    %709 = vmatpush1.msra.mxu0 0.0
    %710 = vmatprep.mubr.f32.mxu0 0.0
    %711 = vmatmul.mubr.f32.gmra.mrb[0].mxu0 %v60
    %v712 = vpop.f32.mrb[0].mxu0
    %v713 = vadd.f32 0.0, %v712
    %v714 = vpop.f32.mrb[0].mxu0
    %v715 = vadd.f32 0.0, %v714
    %716 = vmatprep.mubr.f32.mxu0 0.0
    %717 = vmatmul.mubr.f32.gmra.mrb[0].mxu0 %v63
    %v718 = vpop.f32.mrb[0].mxu0
    %v719 = vadd.f32 0.0, %v718
    %v720 = vpop.f32.mrb[0].mxu0
    %v721 = vadd.f32 0.0, %v720
    %722 = vmatprep.mubr.f32.mxu0 0.0
    %723 = vmatmul.mubr.f32.gmra.mrb[0].mxu0 %v66
    %v724 = vpop.f32.mrb[0].mxu0
    %v725 = vadd.f32 0.0, %v724
    %v726 = vpop.f32.mrb[0].mxu0
    %v727 = vadd.f32 0.0, %v726
    %728 = vmatprep.mubr.f32.mxu0 0.0
    %729 = vmatmul.mubr.f32.gmra.mrb[0].mxu0 %v69
    %v730 = vpop.f32.mrb[0].mxu0
    %v731 = vadd.f32 0.0, %v730
    %v732 = vpop.f32.mrb[0].mxu0
    %v733 = vadd.f32 0.0, %v732
    %734 = vdwg.mxu0
    %v736 = vcombine.high %v51, %v51
    %v737 = vsel %vm71, %v51, 0
    %v739 = vsel %vm71, %v736, 0
    %741 = vmatprep.subr.mxu0 %v739
    %742 = vmatpush1.msra.mxu0 %v737
    %743 = vmatprep.subr.mxu0 0.0
    %744 = vmatpush1.msra.mxu0 0.0
    %745 = vmatprep.subr.mxu0 0.0
    %746 = vmatpush1.msra.mxu0 0.0
    %747 = vmatprep.subr.mxu0 0.0
    %748 = vmatpush1.msra.mxu0 0.0
    %749 = vmatprep.subr.mxu0 0.0
    %750 = vmatpush1.msra.mxu0 0.0
    %751 = vmatprep.subr.mxu0 0.0
    %752 = vmatpush1.msra.mxu0 0.0
    %753 = vmatprep.subr.mxu0 0.0
    %754 = vmatpush1.msra.mxu0 0.0
    %755 = vmatprep.subr.mxu0 0.0
    %756 = vmatpush1.msra.mxu0 0.0
    %757 = vmatprep.subr.mxu0 0.0
    %758 = vmatpush1.msra.mxu0 0.0
    %759 = vmatprep.subr.mxu0 0.0
    %760 = vmatpush1.msra.mxu0 0.0
    %761 = vmatprep.subr.mxu0 0.0
    %762 = vmatpush1.msra.mxu0 0.0
    %763 = vmatprep.subr.mxu0 0.0
    %764 = vmatpush1.msra.mxu0 0.0
    %765 = vmatprep.subr.mxu0 0.0
    %766 = vmatpush1.msra.mxu0 0.0
    %767 = vmatprep.subr.mxu0 0.0
    %768 = vmatpush1.msra.mxu0 0.0
    %769 = vmatprep.subr.mxu0 0.0
    %770 = vmatpush1.msra.mxu0 0.0
    %771 = vmatprep.subr.mxu0 0.0
    %772 = vmatpush1.msra.mxu0 0.0
    %773 = vmatprep.subr.mxu0 0.0
    %774 = vmatpush1.msra.mxu0 0.0
    %775 = vmatprep.subr.mxu0 0.0
    %776 = vmatpush1.msra.mxu0 0.0
    %777 = vmatprep.subr.mxu0 0.0
    %778 = vmatpush1.msra.mxu0 0.0
    %779 = vmatprep.subr.mxu0 0.0
    %780 = vmatpush1.msra.mxu0 0.0
    %781 = vmatprep.subr.mxu0 0.0
    %782 = vmatpush1.msra.mxu0 0.0
    %783 = vmatprep.subr.mxu0 0.0
    %784 = vmatpush1.msra.mxu0 0.0
    %785 = vmatprep.subr.mxu0 0.0
    %786 = vmatpush1.msra.mxu0 0.0
    %787 = vmatprep.subr.mxu0 0.0
    %788 = vmatpush1.msra.mxu0 0.0
    %789 = vmatprep.subr.mxu0 0.0
    %790 = vmatpush1.msra.mxu0 0.0
    %791 = vmatprep.subr.mxu0 0.0
    %792 = vmatpush1.msra.mxu0 0.0
    %793 = vmatprep.subr.mxu0 0.0
    %794 = vmatpush1.msra.mxu0 0.0
    %795 = vmatprep.subr.mxu0 0.0
    %796 = vmatpush1.msra.mxu0 0.0
    %797 = vmatprep.subr.mxu0 0.0
    %798 = vmatpush1.msra.mxu0 0.0
    %799 = vmatprep.subr.mxu0 0.0
    %800 = vmatpush1.msra.mxu0 0.0
    %801 = vmatprep.subr.mxu0 0.0
    %802 = vmatpush1.msra.mxu0 0.0
    %803 = vmatprep.subr.mxu0 0.0
    %804 = vmatpush1.msra.mxu0 0.0
    %805 = vmatprep.mubr.f32.mxu0 0.0
    %806 = vmatmul.mubr.f32.gmra.mrb[0].mxu0 %v60
    %v807 = vpop.f32.mrb[0].mxu0
    %v808 = vadd.f32 0.0, %v807
    %v809 = vpop.f32.mrb[0].mxu0
    %v810 = vadd.f32 0.0, %v809
    %811 = vmatprep.mubr.f32.mxu0 0.0
    %812 = vmatmul.mubr.f32.gmra.mrb[0].mxu0 %v63
    %v813 = vpop.f32.mrb[0].mxu0
    %v814 = vadd.f32 0.0, %v813
    %v815 = vpop.f32.mrb[0].mxu0
    %v816 = vadd.f32 0.0, %v815
    %817 = vmatprep.mubr.f32.mxu0 0.0
    %818 = vmatmul.mubr.f32.gmra.mrb[0].mxu0 %v66
    %v819 = vpop.f32.mrb[0].mxu0
    %v820 = vadd.f32 0.0, %v819
    %v821 = vpop.f32.mrb[0].mxu0
    %v822 = vadd.f32 0.0, %v821
    %823 = vmatprep.mubr.f32.mxu0 0.0
    %824 = vmatmul.mubr.f32.gmra.mrb[0].mxu0 %v69
    %v825 = vpop.f32.mrb[0].mxu0
    %v826 = vadd.f32 0.0, %v825
    %v827 = vpop.f32.mrb[0].mxu0
    %v828 = vadd.f32 0.0, %v827
    %829 = vdwg.mxu0
    %v830 = vmax.f32 %v143, 0.0
    %v831 = vmax.f32 %v145, 0.0
    %v832 = vmax.f32 %v149, 0.0
    %v833 = vmax.f32 %v151, 0.0
    %v834 = vmax.f32 %v155, 0.0
    %v835 = vmax.f32 %v157, 0.0
    %v836 = vmax.f32 %v161, 0.0
    %v837 = vmax.f32 %v163, 0.0
    %v838 = vmax.f32 %v238, 0.0
    %v839 = vmax.f32 %v240, 0.0
    %v840 = vmax.f32 %v244, 0.0
    %v841 = vmax.f32 %v246, 0.0
    %v842 = vmax.f32 %v250, 0.0
    %v843 = vmax.f32 %v252, 0.0
    %v844 = vmax.f32 %v256, 0.0
    %v845 = vmax.f32 %v258, 0.0
    %v846 = vmax.f32 %v333, 0.0
    %v847 = vmax.f32 %v335, 0.0
    %v848 = vmax.f32 %v339, 0.0
    %v849 = vmax.f32 %v341, 0.0
    %v850 = vmax.f32 %v345, 0.0
    %v851 = vmax.f32 %v347, 0.0
    %v852 = vmax.f32 %v351, 0.0
    %v853 = vmax.f32 %v353, 0.0
    %v854 = vmax.f32 %v428, 0.0
    %v855 = vmax.f32 %v430, 0.0
    %v856 = vmax.f32 %v434, 0.0
    %v857 = vmax.f32 %v436, 0.0
    %v858 = vmax.f32 %v440, 0.0
    %v859 = vmax.f32 %v442, 0.0
    %v860 = vmax.f32 %v446, 0.0
    %v861 = vmax.f32 %v448, 0.0
    %v862 = vmax.f32 %v523, 0.0
    %v863 = vmax.f32 %v525, 0.0
    %v864 = vmax.f32 %v529, 0.0
    %v865 = vmax.f32 %v531, 0.0
    %v866 = vmax.f32 %v535, 0.0
    %v867 = vmax.f32 %v537, 0.0
    %v868 = vmax.f32 %v541, 0.0
    %v869 = vmax.f32 %v543, 0.0
    %v870 = vmax.f32 %v618, 0.0
    %v871 = vmax.f32 %v620, 0.0
    %v872 = vmax.f32 %v624, 0.0
    %v873 = vmax.f32 %v626, 0.0
    %v874 = vmax.f32 %v630, 0.0
    %v875 = vmax.f32 %v632, 0.0
    %v876 = vmax.f32 %v636, 0.0
    %v877 = vmax.f32 %v638, 0.0
    %v878 = vmax.f32 %v713, 0.0
    %v879 = vmax.f32 %v715, 0.0
    %v880 = vmax.f32 %v719, 0.0
    %v881 = vmax.f32 %v721, 0.0
    %v882 = vmax.f32 %v725, 0.0
    %v883 = vmax.f32 %v727, 0.0
    %v884 = vmax.f32 %v731, 0.0
    %v885 = vmax.f32 %v733, 0.0
    %v886 = vmax.f32 %v808, 0.0
    %v887 = vmax.f32 %v810, 0.0
    %v888 = vmax.f32 %v814, 0.0
    %v889 = vmax.f32 %v816, 0.0
    %v890 = vmax.f32 %v820, 0.0
    %v891 = vmax.f32 %v822, 0.0
    %v892 = vmax.f32 %v826, 0.0
    %v893 = vmax.f32 %v828, 0.0
    %v894 = vld [vmem:[#allocation2] sm:$0xff]
    %v895 = vadd.f32 %v830, %v831
    %896 = vadd.xlane.f32.xlu0 %v895
    %v897 = vpop.xlane.xlu0 %896
    %v898 = vadd.f32 %v832, %v833
    %899 = vadd.xlane.f32.xlu0 %v898
    %v900 = vpop.xlane.xlu0 %899
    %v901 = vadd.f32 %v834, %v835
    %902 = vadd.xlane.f32.xlu0 %v901
    %v903 = vpop.xlane.xlu0 %902
    %v904 = vadd.f32 %v836, %v837
    %905 = vadd.xlane.f32.xlu0 %v904
    %v906 = vpop.xlane.xlu0 %905
    %v907 = vadd.f32 %v838, %v839
    %908 = vadd.xlane.f32.xlu0 %v907
    %v909 = vpop.xlane.xlu0 %908
    %v910 = vadd.f32 %v840, %v841
    %911 = vadd.xlane.f32.xlu0 %v910
    %v912 = vpop.xlane.xlu0 %911
    %v913 = vadd.f32 %v842, %v843
    %914 = vadd.xlane.f32.xlu0 %v913
    %v915 = vpop.xlane.xlu0 %914
    %v916 = vadd.f32 %v844, %v845
    %917 = vadd.xlane.f32.xlu0 %v916
    %v918 = vpop.xlane.xlu0 %917
    %v919 = vadd.f32 %v846, %v847
    %920 = vadd.xlane.f32.xlu0 %v919
    %v921 = vpop.xlane.xlu0 %920
    %v922 = vadd.f32 %v848, %v849
    %923 = vadd.xlane.f32.xlu0 %v922
    %v924 = vpop.xlane.xlu0 %923
    %v925 = vadd.f32 %v850, %v851
    %926 = vadd.xlane.f32.xlu0 %v925
    %v927 = vpop.xlane.xlu0 %926
    %v928 = vadd.f32 %v852, %v853
    %929 = vadd.xlane.f32.xlu0 %v928
    %v930 = vpop.xlane.xlu0 %929
    %v931 = vadd.f32 %v854, %v855
    %932 = vadd.xlane.f32.xlu0 %v931
    %v933 = vpop.xlane.xlu0 %932
    %v934 = vadd.f32 %v856, %v857
    %935 = vadd.xlane.f32.xlu0 %v934
    %v936 = vpop.xlane.xlu0 %935
    %v937 = vadd.f32 %v858, %v859
    %938 = vadd.xlane.f32.xlu0 %v937
    %v939 = vpop.xlane.xlu0 %938
    %v940 = vadd.f32 %v860, %v861
    %941 = vadd.xlane.f32.xlu0 %v940
    %v942 = vpop.xlane.xlu0 %941
    %v943 = vadd.f32 %v862, %v863
    %944 = vadd.xlane.f32.xlu0 %v943
    %v945 = vpop.xlane.xlu0 %944
    %v946 = vadd.f32 %v864, %v865
    %947 = vadd.xlane.f32.xlu0 %v946
    %v948 = vpop.xlane.xlu0 %947
    %v949 = vadd.f32 %v866, %v867
    %950 = vadd.xlane.f32.xlu0 %v949
    %v951 = vpop.xlane.xlu0 %950
    %v952 = vadd.f32 %v868, %v869
    %953 = vadd.xlane.f32.xlu0 %v952
    %v954 = vpop.xlane.xlu0 %953
    %v955 = vadd.f32 %v870, %v871
    %956 = vadd.xlane.f32.xlu0 %v955
    %v957 = vpop.xlane.xlu0 %956
    %v958 = vadd.f32 %v872, %v873
    %959 = vadd.xlane.f32.xlu0 %v958
    %v960 = vpop.xlane.xlu0 %959
    %v961 = vadd.f32 %v874, %v875
    %962 = vadd.xlane.f32.xlu0 %v961
    %v963 = vpop.xlane.xlu0 %962
    %v964 = vadd.f32 %v876, %v877
    %965 = vadd.xlane.f32.xlu0 %v964
    %v966 = vpop.xlane.xlu0 %965
    %v967 = vadd.f32 %v878, %v879
    %968 = vadd.xlane.f32.xlu0 %v967
    %v969 = vpop.xlane.xlu0 %968
    %v970 = vadd.f32 %v880, %v881
    %971 = vadd.xlane.f32.xlu0 %v970
    %v972 = vpop.xlane.xlu0 %971
    %v973 = vadd.f32 %v882, %v883
    %974 = vadd.xlane.f32.xlu0 %v973
    %v975 = vpop.xlane.xlu0 %974
    %v976 = vadd.f32 %v884, %v885
    %977 = vadd.xlane.f32.xlu0 %v976
    %v978 = vpop.xlane.xlu0 %977
    %v979 = vadd.f32 %v886, %v887
    %980 = vadd.xlane.f32.xlu0 %v979
    %v981 = vpop.xlane.xlu0 %980
    %v982 = vadd.f32 %v888, %v889
    %983 = vadd.xlane.f32.xlu0 %v982
    %v984 = vpop.xlane.xlu0 %983
    %v985 = vadd.f32 %v890, %v891
    %986 = vadd.xlane.f32.xlu0 %v985
    %v987 = vpop.xlane.xlu0 %986
    %v988 = vadd.f32 %v892, %v893
    %989 = vadd.xlane.f32.xlu0 %v988
    %v990 = vpop.xlane.xlu0 %989
    %v1023 = vlaneseq
    %v1024 = vand.u32 %v1023, 127
    %v1025 = vlaneseq
    %v1026 = vshrl.u32 %v1025, 7
    %v1027 = vsub.s32 %v1024, %v1026
    %v1028 = vrot.slane %v897, %v1027
    %v1029 = vadd.s32 %v1024, 4294967288
    %v1030 = vlaneseq
    %v1031 = vshrl.u32 %v1030, 7
    %v1032 = vsub.s32 %v1029, %v1031
    %v1033 = vrot.slane %v900, %v1032
    %vm1034 = vcmask 130112
    %v1035 = vsel %vm1034, %v1033, %v1028
    %v1036 = vadd.s32 %v1024, 4294967280
    %v1037 = vlaneseq
    %v1038 = vshrl.u32 %v1037, 7
    %v1039 = vsub.s32 %v1036, %v1038
    %v1040 = vrot.slane %v903, %v1039
    %vm1041 = vcmask 195712
    %v1042 = vsel %vm1041, %v1040, %v1035
    %v1043 = vadd.s32 %v1024, 4294967272
    %v1044 = vlaneseq
    %v1045 = vshrl.u32 %v1044, 7
    %v1046 = vsub.s32 %v1043, %v1045
    %v1047 = vrot.slane %v906, %v1046
    %vm1048 = vcmask 261312
    %v1049 = vsel %vm1048, %v1047, %v1042
    %v1050 = vlaneseq
    %v1051 = vshrl.u32 %v1050, 7
    %v1052 = vsub.s32 %v1024, %v1051
    %v1053 = vrot.slane %v909, %v1052
    %v1054 = vlaneseq
    %v1055 = vshrl.u32 %v1054, 7
    %v1056 = vsub.s32 %v1029, %v1055
    %v1057 = vrot.slane %v912, %v1056
    %v1058 = vsel %vm1034, %v1057, %v1053
    %v1059 = vlaneseq
    %v1060 = vshrl.u32 %v1059, 7
    %v1061 = vsub.s32 %v1036, %v1060
    %v1062 = vrot.slane %v915, %v1061
    %v1063 = vsel %vm1041, %v1062, %v1058
    %v1064 = vlaneseq
    %v1065 = vshrl.u32 %v1064, 7
    %v1066 = vsub.s32 %v1043, %v1065
    %v1067 = vrot.slane %v918, %v1066
    %v1068 = vsel %vm1048, %v1067, %v1063
    %v1069 = vlaneseq
    %v1070 = vshrl.u32 %v1069, 7
    %v1071 = vsub.s32 %v1024, %v1070
    %v1072 = vrot.slane %v921, %v1071
    %v1073 = vlaneseq
    %v1074 = vshrl.u32 %v1073, 7
    %v1075 = vsub.s32 %v1029, %v1074
    %v1076 = vrot.slane %v924, %v1075
    %v1077 = vsel %vm1034, %v1076, %v1072
    %v1078 = vlaneseq
    %v1079 = vshrl.u32 %v1078, 7
    %v1080 = vsub.s32 %v1036, %v1079
    %v1081 = vrot.slane %v927, %v1080
    %v1082 = vsel %vm1041, %v1081, %v1077
    %v1083 = vlaneseq
    %v1084 = vshrl.u32 %v1083, 7
    %v1085 = vsub.s32 %v1043, %v1084
    %v1086 = vrot.slane %v930, %v1085
    %v1087 = vsel %vm1048, %v1086, %v1082
    %v1088 = vlaneseq
    %v1089 = vshrl.u32 %v1088, 7
    %v1090 = vsub.s32 %v1024, %v1089
    %v1091 = vrot.slane %v933, %v1090
    %v1092 = vlaneseq
    %v1093 = vshrl.u32 %v1092, 7
    %v1094 = vsub.s32 %v1029, %v1093
    %v1095 = vrot.slane %v936, %v1094
    %v1096 = vsel %vm1034, %v1095, %v1091
    %v1097 = vlaneseq
    %v1098 = vshrl.u32 %v1097, 7
    %v1099 = vsub.s32 %v1036, %v1098
    %v1100 = vrot.slane %v939, %v1099
    %v1101 = vsel %vm1041, %v1100, %v1096
    %v1102 = vlaneseq
    %v1103 = vshrl.u32 %v1102, 7
    %v1104 = vsub.s32 %v1043, %v1103
    %v1105 = vrot.slane %v942, %v1104
    %v1106 = vsel %vm1048, %v1105, %v1101
    %v1107 = vlaneseq
    %v1108 = vshrl.u32 %v1107, 7
    %v1109 = vsub.s32 %v1024, %v1108
    %v1110 = vrot.slane %v945, %v1109
    %v1111 = vlaneseq
    %v1112 = vshrl.u32 %v1111, 7
    %v1113 = vsub.s32 %v1029, %v1112
    %v1114 = vrot.slane %v948, %v1113
    %v1115 = vsel %vm1034, %v1114, %v1110
    %v1116 = vlaneseq
    %v1117 = vshrl.u32 %v1116, 7
    %v1118 = vsub.s32 %v1036, %v1117
    %v1119 = vrot.slane %v951, %v1118
    %v1120 = vsel %vm1041, %v1119, %v1115
    %v1121 = vlaneseq
    %v1122 = vshrl.u32 %v1121, 7
    %v1123 = vsub.s32 %v1043, %v1122
    %v1124 = vrot.slane %v954, %v1123
    %v1125 = vsel %vm1048, %v1124, %v1120
    %v1126 = vlaneseq
    %v1127 = vshrl.u32 %v1126, 7
    %v1128 = vsub.s32 %v1024, %v1127
    %v1129 = vrot.slane %v957, %v1128
    %v1130 = vlaneseq
    %v1131 = vshrl.u32 %v1130, 7
    %v1132 = vsub.s32 %v1029, %v1131
    %v1133 = vrot.slane %v960, %v1132
    %v1134 = vsel %vm1034, %v1133, %v1129
    %v1135 = vlaneseq
    %v1136 = vshrl.u32 %v1135, 7
    %v1137 = vsub.s32 %v1036, %v1136
    %v1138 = vrot.slane %v963, %v1137
    %v1139 = vsel %vm1041, %v1138, %v1134
    %v1140 = vlaneseq
    %v1141 = vshrl.u32 %v1140, 7
    %v1142 = vsub.s32 %v1043, %v1141
    %v1143 = vrot.slane %v966, %v1142
    %v1144 = vsel %vm1048, %v1143, %v1139
    %v1145 = vlaneseq
    %v1146 = vshrl.u32 %v1145, 7
    %v1147 = vsub.s32 %v1024, %v1146
    %v1148 = vrot.slane %v969, %v1147
    %v1149 = vlaneseq
    %v1150 = vshrl.u32 %v1149, 7
    %v1151 = vsub.s32 %v1029, %v1150
    %v1152 = vrot.slane %v972, %v1151
    %v1153 = vsel %vm1034, %v1152, %v1148
    %v1154 = vlaneseq
    %v1155 = vshrl.u32 %v1154, 7
    %v1156 = vsub.s32 %v1036, %v1155
    %v1157 = vrot.slane %v975, %v1156
    %v1158 = vsel %vm1041, %v1157, %v1153
    %v1159 = vlaneseq
    %v1160 = vshrl.u32 %v1159, 7
    %v1161 = vsub.s32 %v1043, %v1160
    %v1162 = vrot.slane %v978, %v1161
    %v1163 = vsel %vm1048, %v1162, %v1158
    %v1164 = vlaneseq
    %v1165 = vshrl.u32 %v1164, 7
    %v1166 = vsub.s32 %v1024, %v1165
    %v1167 = vrot.slane %v981, %v1166
    %v1168 = vlaneseq
    %v1169 = vshrl.u32 %v1168, 7
    %v1170 = vsub.s32 %v1029, %v1169
    %v1171 = vrot.slane %v984, %v1170
    %v1172 = vsel %vm1034, %v1171, %v1167
    %v1173 = vlaneseq
    %v1174 = vshrl.u32 %v1173, 7
    %v1175 = vsub.s32 %v1036, %v1174
    %v1176 = vrot.slane %v987, %v1175
    %v1177 = vsel %vm1041, %v1176, %v1172
    %v1178 = vlaneseq
    %v1179 = vshrl.u32 %v1178, 7
    %v1180 = vsub.s32 %v1043, %v1179
    %v1181 = vrot.slane %v990, %v1180
    %v1182 = vsel %vm1048, %v1181, %v1177
    %vm1183 = vcmask 1041409
    %v1184 = vsel %vm1183, %v1068, %v1049
    %vm1185 = vcmask 1042434
    %v1186 = vsel %vm1185, %v1087, %v1184
    %vm1187 = vcmask 1043459
    %v1188 = vsel %vm1187, %v1106, %v1186
    %vm1189 = vcmask 1044484
    %v1190 = vsel %vm1189, %v1125, %v1188
    %vm1191 = vcmask 1045509
    %v1192 = vsel %vm1191, %v1144, %v1190
    %vm1193 = vcmask 1046534
    %v1194 = vsel %vm1193, %v1163, %v1192
    %vm1195 = vcmask 1047559
    %v1196 = vsel %vm1195, %v1182, %v1194
    %v1198 = vadd.f32 %v894, %v1196
    %vm1199 = vcmask 261120
    %1200 = vst.msk [vmem:[#allocation2] sm:$0xff] %vm1199, %v1198
    // Predicated region
    $region34: #{tpu_custom_call.1} parent=1 // pred_check
      %p1201 = pneg %p38
    $region35: #{tpu_custom_call.1} parent=1 // pred_check_branch
      %1203 = sbr.rel (%p1201) target = $region37
    $region36: #{tpu_custom_call.1} parent=1 // pred_region
      %v1204 = vld [vmem:[#allocation2] sm:$0xff]
      %v1205 = vld [vmem:[%s3] sm:$0xff]
      %v1206 = vld [vmem:[%s3 + $0x8] sm:$0xff]
      %v1207 = vld [vmem:[%s3 + $0x10] sm:$0xff]
      %v1208 = vld [vmem:[%s3 + $0x18] sm:$0xff]
      %v1209 = vld [vmem:[%s1] sm:$0xff]
      %v1210 = vld [vmem:[%s4] sm:$0xf]
      %v1212 = vsel %vm58, %v1209, 0
      %v1215 = vsel %vm71, %v1210, 0
      %1217 = vmatprep.subr.mxu0 0.0
      %1218 = vmatpush1.msra.mxu0 %v1215
      %1219 = vmatprep.subr.mxu0 0.0
      %1220 = vmatpush1.msra.mxu0 0.0
      %1221 = vmatprep.subr.mxu0 0.0
      %1222 = vmatpush1.msra.mxu0 0.0
      %1223 = vmatprep.subr.mxu0 0.0
      %1224 = vmatpush1.msra.mxu0 0.0
      %1225 = vmatprep.subr.mxu0 0.0
      %1226 = vmatpush1.msra.mxu0 0.0
      %1227 = vmatprep.subr.mxu0 0.0
      %1228 = vmatpush1.msra.mxu0 0.0
      %1229 = vmatprep.subr.mxu0 0.0
      %1230 = vmatpush1.msra.mxu0 0.0
      %1231 = vmatprep.subr.mxu0 0.0
      %1232 = vmatpush1.msra.mxu0 0.0
      %1233 = vmatprep.subr.mxu0 0.0
      %1234 = vmatpush1.msra.mxu0 0.0
      %1235 = vmatprep.subr.mxu0 0.0
      %1236 = vmatpush1.msra.mxu0 0.0
      %1237 = vmatprep.subr.mxu0 0.0
      %1238 = vmatpush1.msra.mxu0 0.0
      %1239 = vmatprep.subr.mxu0 0.0
      %1240 = vmatpush1.msra.mxu0 0.0
      %1241 = vmatprep.subr.mxu0 0.0
      %1242 = vmatpush1.msra.mxu0 0.0
      %1243 = vmatprep.subr.mxu0 0.0
      %1244 = vmatpush1.msra.mxu0 0.0
      %1245 = vmatprep.subr.mxu0 0.0
      %1246 = vmatpush1.msra.mxu0 0.0
      %1247 = vmatprep.subr.mxu0 0.0
      %1248 = vmatpush1.msra.mxu0 0.0
      %1249 = vmatprep.subr.mxu0 0.0
      %1250 = vmatpush1.msra.mxu0 0.0
      %1251 = vmatprep.subr.mxu0 0.0
      %1252 = vmatpush1.msra.mxu0 0.0
      %1253 = vmatprep.subr.mxu0 0.0
      %1254 = vmatpush1.msra.mxu0 0.0
      %1255 = vmatprep.subr.mxu0 0.0
      %1256 = vmatpush1.msra.mxu0 0.0
      %1257 = vmatprep.subr.mxu0 0.0
      %1258 = vmatpush1.msra.mxu0 0.0
      %1259 = vmatprep.subr.mxu0 0.0
      %1260 = vmatpush1.msra.mxu0 0.0
      %1261 = vmatprep.subr.mxu0 0.0
      %1262 = vmatpush1.msra.mxu0 0.0
      %1263 = vmatprep.subr.mxu0 0.0
      %1264 = vmatpush1.msra.mxu0 0.0
      %1265 = vmatprep.subr.mxu0 0.0
      %1266 = vmatpush1.msra.mxu0 0.0
      %1267 = vmatprep.subr.mxu0 0.0
      %1268 = vmatpush1.msra.mxu0 0.0
      %1269 = vmatprep.subr.mxu0 0.0
      %1270 = vmatpush1.msra.mxu0 0.0
      %1271 = vmatprep.subr.mxu0 0.0
      %1272 = vmatpush1.msra.mxu0 0.0
      %1273 = vmatprep.subr.mxu0 0.0
      %1274 = vmatpush1.msra.mxu0 0.0
      %1275 = vmatprep.subr.mxu0 0.0
      %1276 = vmatpush1.msra.mxu0 0.0
      %1277 = vmatprep.subr.mxu0 0.0
      %1278 = vmatpush1.msra.mxu0 0.0
      %1279 = vmatprep.subr.mxu0 0.0
      %1280 = vmatpush1.msra.mxu0 0.0
      %1281 = vmatprep.mubr.f32.mxu0 0.0
      %1282 = vmatmul.mubr.f32.gmra.mrb[0].mxu0 %v1212
      %v1283 = vpop.f32.mrb[0].mxu0
      %v1284 = vadd.f32 0.0, %v1283
      %v1285 = vpop.f32.mrb[0].mxu0
      %1286 = vdwg.mxu0
      %v1288 = vsel %vm1199, %v1204, 0
      %1290 = vmatprep.subr.mxu0 0.0
      %1291 = vmatpush1.msra.mxu0 %v1205
      %1292 = vmatprep.subr.mxu0 0.0
      %1293 = vmatpush1.msra.mxu0 %v1206
      %1294 = vmatprep.subr.mxu0 0.0
      %1295 = vmatpush1.msra.mxu0 %v1207
      %1296 = vmatprep.subr.mxu0 0.0
      %1297 = vmatpush1.msra.mxu0 %v1208
      %1298 = vmatprep.subr.mxu0 0.0
      %1299 = vmatpush1.msra.mxu0 0.0
      %1300 = vmatprep.subr.mxu0 0.0
      %1301 = vmatpush1.msra.mxu0 0.0
      %1302 = vmatprep.subr.mxu0 0.0
      %1303 = vmatpush1.msra.mxu0 0.0
      %1304 = vmatprep.subr.mxu0 0.0
      %1305 = vmatpush1.msra.mxu0 0.0
      %1306 = vmatprep.subr.mxu0 0.0
      %1307 = vmatpush1.msra.mxu0 0.0
      %1308 = vmatprep.subr.mxu0 0.0
      %1309 = vmatpush1.msra.mxu0 0.0
      %1310 = vmatprep.subr.mxu0 0.0
      %1311 = vmatpush1.msra.mxu0 0.0
      %1312 = vmatprep.subr.mxu0 0.0
      %1313 = vmatpush1.msra.mxu0 0.0
      %1314 = vmatprep.subr.mxu0 0.0
      %1315 = vmatpush1.msra.mxu0 0.0
      %1316 = vmatprep.subr.mxu0 0.0
      %1317 = vmatpush1.msra.mxu0 0.0
      %1318 = vmatprep.subr.mxu0 0.0
      %1319 = vmatpush1.msra.mxu0 0.0
      %1320 = vmatprep.subr.mxu0 0.0
      %1321 = vmatpush1.msra.mxu0 0.0
      %1322 = vmatprep.subr.mxu0 0.0
      %1323 = vmatpush1.msra.mxu0 0.0
      %1324 = vmatprep.subr.mxu0 0.0
      %1325 = vmatpush1.msra.mxu0 0.0
      %1326 = vmatprep.subr.mxu0 0.0
      %1327 = vmatpush1.msra.mxu0 0.0
      %1328 = vmatprep.subr.mxu0 0.0
      %1329 = vmatpush1.msra.mxu0 0.0
      %1330 = vmatprep.subr.mxu0 0.0
      %1331 = vmatpush1.msra.mxu0 0.0
      %1332 = vmatprep.subr.mxu0 0.0
      %1333 = vmatpush1.msra.mxu0 0.0
      %1334 = vmatprep.subr.mxu0 0.0
      %1335 = vmatpush1.msra.mxu0 0.0
      %1336 = vmatprep.subr.mxu0 0.0
      %1337 = vmatpush1.msra.mxu0 0.0
      %1338 = vmatprep.subr.mxu0 0.0
      %1339 = vmatpush1.msra.mxu0 0.0
      %1340 = vmatprep.subr.mxu0 0.0
      %1341 = vmatpush1.msra.mxu0 0.0
      %1342 = vmatprep.subr.mxu0 0.0
      %1343 = vmatpush1.msra.mxu0 0.0
      %1344 = vmatprep.subr.mxu0 0.0
      %1345 = vmatpush1.msra.mxu0 0.0
      %1346 = vmatprep.subr.mxu0 0.0
      %1347 = vmatpush1.msra.mxu0 0.0
      %1348 = vmatprep.subr.mxu0 0.0
      %1349 = vmatpush1.msra.mxu0 0.0
      %1350 = vmatprep.subr.mxu0 0.0
      %1351 = vmatpush1.msra.mxu0 0.0
      %1352 = vmatprep.subr.mxu0 0.0
      %1353 = vmatpush1.msra.mxu0 0.0
      %1354 = vmatprep.mubr.f32.mxu0 0.0
      %1355 = vmatmul.mubr.f32.gmra.mrb[0].mxu0 %v1288
      %v1356 = vpop.f32.mrb[0].mxu0
      %v1357 = vadd.f32 %v1284, %v1356
      %v1358 = vpop.f32.mrb[0].mxu0
      %1359 = vdwg.mxu0
      %v1360 = vld [vmem:[%s5] sm:$0x1]
      %v1362 = vlaneseq
      %v1363 = vshrl.u32 %v1362, 7
      %v1364 = vsub.s32 0, %v1363
      %v1365 = vrot.slane %v1360, %v1364
      %v1367 = vadd.f32 %v1357, %v1365
      %1368 = vst [vmem:[#allocation6] sm:$0xff] %v1367
    $region37: #{tpu_custom_call.1} parent=1 // pred_fallthru
      _
    // Predicated region
    $region38: #{tpu_custom_call.1} parent=1 // pred_check
      _
    $region39: #{tpu_custom_call.1} parent=1 // pred_check_branch
      %1370 = sbr.rel (0) target = $region41
    $region40: #{tpu_custom_call.1} parent=1 // pred_region
      %s1372 = ssub.s32 128, 128
      %1373 = vsyncadd [#allocation5], %s1372
      %s1375 = sshll.u32 [#allocation6], 4
      %s1376 = int_to_ptr.vmem [resolvable:$true] %s1375
      %1378 = dma.vmem_to_hbm [thread:$0]  %s1376, 128, %s6, [#allocation5]
    $region41: #{tpu_custom_call.1} parent=1 // pred_fallthru
      _
    // Predicated region
    $region42: #{tpu_custom_call.1} parent=1 // pred_check
      _
    $region43: #{tpu_custom_call.1} parent=1 // pred_check_branch
      %1380 = sbr.rel (0) target = $region45
    $region44: #{tpu_custom_call.1} parent=1 // pred_region
      %1381 = dma.done [#allocation5], 128
    $region45: #{tpu_custom_call.1} parent=1 // pred_fallthru
      _
    %1382 = vsyncpa [#allocation4], 1
    %1383 = vsyncpa [#allocation5], 1

</llo_original>
